<compile_context>
chip_gen: v7x
topology: tpu7x:2x2x1
jax: 0.10.0
libtpu: 0.0.40
codegen_flags: <defaults>
</compile_context>

<pallas_src>
import math

import jax
import jax.numpy as jnp
from jax.experimental import pallas as pl
from jax.experimental.pallas import tpu as pltpu

_LANE = 128


def _round_up(x, m):
    return ((x + m - 1) // m) * m


def _vmem_capacity_bytes():
    """Per-core VMEM capacity; conservative (v7x-sized) fallback if unknown."""
    try:
        info = pltpu.get_tpu_info()
        cap = getattr(info, "vmem_capacity_bytes", None)
        if cap:
            return int(cap)
    except Exception:
        pass
    return 64 << 20


def _pick_row_tile(n_rows, bytes_per_row, budget_bytes):
    """Largest sublane-aligned row tile (from a fixed menu) whose working set
    (2 * tile * bytes_per_row) fits the budget.  The caller pads n_rows up to a
    multiple of the returned tile, so any returned value is legal (no
    full-extent fallback)."""
    n8 = _round_up(max(n_rows, 1), 8)
    fitting = [c for c in (1024, 512, 256, 128, 64, 32, 16, 8)
               if 2 * c * bytes_per_row <= budget_bytes]
    if not fitting:
        # TODO(synk): rows this wide need a K-split over adjacency columns.
        return 8
    best = fitting[0]
    # Prefer an exact divisor of the 8-aligned extent (zero padding) if it is
    # at most 2x smaller than the biggest fitting tile.
    for c in fitting:
        if n8 % c == 0 and 2 * c >= best:
            return min(c, n8)
    return min(best, n8)


# ---------------------------------------------------------------------------
# Kernel 1: hidden = text @ W   (flattened over batch*nodes, stored in bf16)
# ---------------------------------------------------------------------------
def _hidden_kernel(text_ref, w_ref, hid_ref):
    hid_ref[...] = jnp.dot(
        text_ref[...], w_ref[...], preferred_element_type=jnp.float32
    ).astype(hid_ref.dtype)


# ---------------------------------------------------------------------------
# Kernel 2: out = relu((adj @ hidden) / (rowsum(adj) + 1)) + bias
#   grid = (B, N_rows_padded // TM); one (TM, N) adjacency row block per step.
#   adj / hidden are bf16; accumulation and the row sum are f32.
# ---------------------------------------------------------------------------
def _gcn_agg_kernel(adj_ref, hid_ref, b_ref, out_ref):
    adj = adj_ref[...]                         # (TM, N)        bf16
    hid = hid_ref[...]                         # (N, F_out_pad) bf16
    bias = b_ref[...]                          # (1, F_out_pad) f32

    # Row degree + 1, accumulated in f32 (XLU reduce; overlaps the MXU work).
    demon = jnp.sum(adj.astype(jnp.float32), axis=1, keepdims=True) + 1.0
    inv = pl.reciprocal(demon)                 # exact; (TM, 1) is negligible

    agg = jnp.dot(adj, hid, preferred_element_type=jnp.float32)  # MXU bf16
    out = jnp.maximum(agg * inv, 0.0) + bias
    out_ref[...] = out.astype(out_ref.dtype)


@jax.jit
def gcn_layer(text, adj, weight, bias=None):
    B, N, F_in = text.shape
    F_in_w, F_out = weight.shape
    assert F_in_w == F_in
    out_dtype = text.dtype
    f32 = jnp.dtype(jnp.float32).itemsize
    bf16 = jnp.dtype(jnp.bfloat16).itemsize
    out_bytes = jnp.dtype(out_dtype).itemsize

    # Generation-aware VMEM budgets (never the full physical VMEM).
    cap = _vmem_capacity_bytes()
    if cap >= (96 << 20):                       # v5e / v6e: 128 MiB per core
        adj_budget, vmem_ceiling = 44 << 20, 100 << 20
    else:                                       # v7x: 64 MiB per TensorCore
        adj_budget, vmem_ceiling = 16 << 20, 48 << 20

    # Lane-dense output features: pad F_out up to a multiple of 128.
    F_out_pad = max(_LANE, _round_up(F_out, _LANE))
    w_pad = jnp.pad(weight, ((0, 0), (0, F_out_pad - F_out)))
    if bias is None:
        bias = jnp.zeros((F_out,), dtype=jnp.float32)
    b_pad = jnp.pad(bias.astype(jnp.float32).reshape(-1),
                    (0, F_out_pad - F_out)).reshape(1, F_out_pad)

    # ------------------------------------------------------------------
    # Stage 1: hidden = text @ W (hoisted out of the adj row-tile loop),
    #          emitted in bf16.
    # ------------------------------------------------------------------
    rows = B * N
    tm_h = _pick_row_tile(rows, F_in * f32 + F_out_pad * bf16,
                          budget_bytes=min(8 << 20, cap // 8))
    rows_p = _round_up(rows, tm_h)
    text_flat = text.reshape(rows, F_in)
    if rows_p != rows:
        text_flat = jnp.pad(text_flat, ((0, rows_p - rows), (0, 0)))

    vmem_h = (2 * tm_h * F_in * f32
              + 2 * F_in * F_out_pad * f32
              + 2 * tm_h * F_out_pad * bf16)
    hidden_flat = pl.pallas_call(
        _hidden_kernel,
        out_shape=jax.ShapeDtypeStruct((rows_p, F_out_pad), jnp.bfloat16),
        grid_spec=pltpu.PrefetchScalarGridSpec(
            num_scalar_prefetch=0,
            grid=(rows_p // tm_h,),
            in_specs=[
                pl.BlockSpec((tm_h, F_in), lambda i: (i, 0)),
                pl.BlockSpec((F_in, F_out_pad), lambda i: (0, 0)),
            ],
            out_specs=pl.BlockSpec((tm_h, F_out_pad), lambda i: (i, 0)),
        ),
        compiler_params=pltpu.CompilerParams(
            dimension_semantics=("parallel",),
            vmem_limit_bytes=int(min(max(2 * vmem_h, 16 << 20), vmem_ceiling)),
        ),
        cost_estimate=pl.CostEstimate(
            flops=2 * rows_p * F_in * F_out_pad,
            transcendentals=0,
            bytes_accessed=(rows_p * F_in * f32
                            + F_in * F_out_pad * f32
                            + rows_p * F_out_pad * bf16),
        ),
    )(text_flat, w_pad)
    hidden = hidden_flat[:rows].reshape(B, N, F_out_pad)

    # ------------------------------------------------------------------
    # Stage 2: tiled aggregation over adjacency row blocks (bf16 operands).
    # ------------------------------------------------------------------
    adj_bf = adj.astype(jnp.bfloat16)
    # Budget uses N * f32 per row: covers the two double-buffered bf16 adj
    # blocks PLUS the f32 temporary used by the in-kernel row-sum reduce.
    tm = _pick_row_tile(N, N * f32, budget_bytes=adj_budget)
    N_rp = _round_up(N, tm)
    if N_rp != N:
        adj_bf = jnp.pad(adj_bf, ((0, 0), (0, N_rp - N), (0, 0)))
    n_row_tiles = N_rp // tm

    vmem_est = (2 * tm * N * bf16              # adj row tiles (double-buffered)
                + tm * N * f32                 # f32 temp for the row-sum
                + 2 * N * F_out_pad * bf16     # per-batch hidden slab
                + 2 * tm * F_out_pad * out_bytes   # output tiles
                + 2 * tm * F_out_pad * f32     # f32 agg / relu temporaries
                + 2 * F_out_pad * f32)         # bias
    vmem_limit = int(min(max(vmem_est + vmem_est // 4 + (2 << 20), 16 << 20),
                         vmem_ceiling))

    out_pad = pl.pallas_call(
        _gcn_agg_kernel,
        out_shape=jax.ShapeDtypeStruct((B, N_rp, F_out_pad), out_dtype),
        grid_spec=pltpu.PrefetchScalarGridSpec(
            num_scalar_prefetch=0,
            grid=(B, n_row_tiles),
            in_specs=[
                pl.BlockSpec((pl.Squeezed(), tm, N), lambda b, i: (b, i, 0)),
                pl.BlockSpec((pl.Squeezed(), N, F_out_pad),
                             lambda b, i: (b, 0, 0)),
                pl.BlockSpec((1, F_out_pad), lambda b, i: (0, 0)),
            ],
            out_specs=pl.BlockSpec((pl.Squeezed(), tm, F_out_pad),
                                   lambda b, i: (b, i, 0)),
        ),
        compiler_params=pltpu.CompilerParams(
            dimension_semantics=("parallel", "parallel"),
            vmem_limit_bytes=vmem_limit,
        ),
        cost_estimate=pl.CostEstimate(
            flops=2 * B * N_rp * N * F_out_pad + B * N_rp * N,
            transcendentals=0,
            bytes_accessed=(B * N_rp * N * bf16        # adj stream (bf16)
                            + B * N * F_out_pad * bf16  # hidden: once per batch
                            + B * N_rp * F_out_pad * out_bytes),
        ),
    )(adj_bf, hidden, b_pad)

    return out_pad[:, :N, :F_out]


def gcn_reference(text, adj, weight, bias):
    hidden = jnp.matmul(text, weight)
    demon = jnp.sum(adj, axis=2, keepdims=True) + 1.0
    output = jnp.matmul(adj, hidden) / demon
    output = jnp.maximum(output, 0.0)
    return output + bias


if __name__ == "__main__":
    # Small deterministic setup: batch=2, nodes=8, in_features=16, out_features=32
    B, N, F_in, F_out = 2, 8, 16, 32
    key = jax.random.PRNGKey(0)
    k_text, k_adj, k_w, k_b = jax.random.split(key, 4)

    text = jax.random.normal(k_text, (B, N, F_in), dtype=jnp.float32)
    # Non-negative "adjacency" (like a normalized graph) to keep it realistic.
    adj = jax.random.uniform(k_adj, (B, N, N), dtype=jnp.float32)

    # Parameter init mirrors reset_parameters(): uniform(-stdv, stdv),
    # stdv = 1/sqrt(out_features).
    stdv = 1.0 / math.sqrt(F_out)
    weight = jax.random.uniform(
        k_w, (F_in, F_out), minval=-stdv, maxval=stdv, dtype=jnp.float32
    )
    bias = jax.random.uniform(
        k_b, (F_out,), minval=-stdv, maxval=stdv, dtype=jnp.float32
    )

    out = gcn_layer(text, adj, weight, bias)
    out = jax.block_until_ready(out)

    ref = gcn_reference(text, adj, weight, bias)
    assert out.shape == (B, N, F_out)
    # Tolerance reflects the bf16 adj/hidden operands in stage 2 (per the perf
    # review); the reciprocal itself is now exact.
    assert jnp.allclose(out, ref, atol=2e-2, rtol=2e-2), "mismatch vs reference"

    print("KERNEL_OK")
</pallas_src>

<mosaic_0001>
module attributes {stable_mosaic.version = 11 : i64} {
  func.func @_hidden_kernel(%arg0: i32, %arg1: memref<16x16xf32, #tpu.memory_space<vmem>>, %arg2: memref<16x128xf32, #tpu.memory_space<vmem>>, %arg3: memref<16x128xbf16, #tpu.memory_space<vmem>>) attributes {dimension_semantics = [#tpu.dimension_semantics<parallel>], iteration_bounds = array<i64: 1>, scalar_prefetch = 0 : i64, scratch_operands = 0 : i64, tpu.core_type = #tpu.core_type<tc>, window_params = [{transform_indices = @transform_0, window_bounds = array<i64: 16, 16>}, {pipeline_mode = #tpu.pipeline_mode<synchronous>, transform_indices = @transform_1, window_bounds = array<i64: 16, 128>}, {transform_indices = @transform_2, window_bounds = array<i64: 16, 128>}]} {
    %c0 = arith.constant 0 : index
    %c0_0 = arith.constant 0 : index
    %0 = vector.load %arg1[%c0, %c0_0] : memref<16x16xf32, #tpu.memory_space<vmem>>, vector<16x16xf32>
    %c0_1 = arith.constant 0 : index
    %c0_2 = arith.constant 0 : index
    %1 = vector.load %arg2[%c0_1, %c0_2] : memref<16x128xf32, #tpu.memory_space<vmem>>, vector<16x128xf32>
    %cst = arith.constant dense<0.000000e+00> : vector<16x128xf32>
    %2 = tpu.matmul %0, %1, %cst {dimension_numbers = #tpu.dot_dimension_numbers<[1], [0], [0], [1], [0, 0, 1, 1], [], []>} : vector<16x16xf32>, vector<16x128xf32>, vector<16x128xf32> -> vector<16x128xf32>
    %3 = arith.truncf %2 : vector<16x128xf32> to vector<16x128xbf16>
    %c0_3 = arith.constant 0 : index
    %c0_4 = arith.constant 0 : index
    %4 = vector.load %arg3[%c0_3, %c0_4] : memref<16x128xbf16, #tpu.memory_space<vmem>>, vector<16x128xbf16>
    tpu.vector_store %arg3[%c0_3, %c0_4], %3 {strides = array<i32>} : memref<16x128xbf16, #tpu.memory_space<vmem>>, vector<16x128xbf16>,
    return
  }
  func.func @transform_0(%arg0: i32) -> (i32, i32) {
    %c0_i32 = arith.constant 0 : i32
    %c0_i32_0 = arith.constant 0 : i32
    return %arg0, %c0_i32 : i32, i32
  }
  func.func @transform_1(%arg0: i32) -> (i32, i32) {
    %c0_i32 = arith.constant 0 : i32
    %c0_i32_0 = arith.constant 0 : i32
    %c0_i32_1 = arith.constant 0 : i32
    return %c0_i32, %c0_i32_0 : i32, i32
  }
  func.func @transform_2(%arg0: i32) -> (i32, i32) {
    %c0_i32 = arith.constant 0 : i32
    %c0_i32_0 = arith.constant 0 : i32
    return %arg0, %c0_i32 : i32, i32
  }
}

module attributes {stable_mosaic.version = 11 : i64} {
  func.func @_gcn_agg_kernel(%arg0: i32, %arg1: i32, %arg2: memref<1x8x8xbf16, #tpu.memory_space<vmem>>, %arg3: memref<1x8x128xbf16, #tpu.memory_space<vmem>>, %arg4: memref<1x128xf32, #tpu.memory_space<vmem>>, %arg5: memref<1x8x128xf32, #tpu.memory_space<vmem>>) attributes {dimension_semantics = [#tpu.dimension_semantics<parallel>, #tpu.dimension_semantics<parallel>], iteration_bounds = array<i64: 2, 1>, scalar_prefetch = 0 : i64, scratch_operands = 0 : i64, tpu.core_type = #tpu.core_type<tc>, window_params = [{transform_indices = @transform_0, window_bounds = array<i64: 1, 8, 8>}, {transform_indices = @transform_1, window_bounds = array<i64: 1, 8, 128>}, {pipeline_mode = #tpu.pipeline_mode<synchronous>, transform_indices = @transform_2, window_bounds = array<i64: 1, 128>}, {transform_indices = @transform_3, window_bounds = array<i64: 1, 8, 128>}]} {
    %c0 = arith.constant 0 : index
    %c0_0 = arith.constant 0 : index
    %c0_1 = arith.constant 0 : index
    %0 = vector.load %arg2[%c0, %c0_0, %c0_1] : memref<1x8x8xbf16, #tpu.memory_space<vmem>>, vector<1x8x8xbf16>
    %1 = vector.shape_cast %0 : vector<1x8x8xbf16> to vector<8x8xbf16>
    %c0_2 = arith.constant 0 : index
    %c0_3 = arith.constant 0 : index
    %c0_4 = arith.constant 0 : index
    %2 = vector.load %arg3[%c0_2, %c0_3, %c0_4] : memref<1x8x128xbf16, #tpu.memory_space<vmem>>, vector<1x8x128xbf16>
    %3 = vector.shape_cast %2 : vector<1x8x128xbf16> to vector<8x128xbf16>
    %c0_5 = arith.constant 0 : index
    %c0_6 = arith.constant 0 : index
    %4 = vector.load %arg4[%c0_5, %c0_6] : memref<1x128xf32, #tpu.memory_space<vmem>>, vector<1x128xf32>
    %5 = arith.extf %1 : vector<8x8xbf16> to vector<8x8xf32>
    %cst = arith.constant dense<0.000000e+00> : vector<8xf32>
    %6 = vector.multi_reduction <add>, %5, %cst [1] : vector<8x8xf32> to vector<8xf32>
    %7 = vector.shape_cast %6 : vector<8xf32> to vector<8x1xf32>
    %cst_7 = arith.constant 1.000000e+00 : f32
    %8 = vector.broadcast %cst_7 : f32 to vector<8x1xf32>
    %9 = arith.addf %7, %8 : vector<8x1xf32>
    %10 = tpu.reciprocal %9 : vector<8x1xf32> -> vector<8x1xf32>
    %cst_8 = arith.constant dense<0.000000e+00> : vector<8x128xf32>
    %11 = tpu.matmul %1, %3, %cst_8 {dimension_numbers = #tpu.dot_dimension_numbers<[1], [0], [0], [1], [0, 0, 1, 1], [], []>} : vector<8x8xbf16>, vector<8x128xbf16>, vector<8x128xf32> -> vector<8x128xf32>
    %12 = vector.broadcast %10 : vector<8x1xf32> to vector<8x128xf32>
    %13 = arith.mulf %11, %12 : vector<8x128xf32>
    %cst_9 = arith.constant 0.000000e+00 : f32
    %14 = vector.broadcast %cst_9 : f32 to vector<8x128xf32>
    %15 = arith.maximumf %13, %14 : vector<8x128xf32>
    %16 = vector.broadcast %4 : vector<1x128xf32> to vector<8x128xf32>
    %17 = arith.addf %15, %16 : vector<8x128xf32>
    %c0_10 = arith.constant 0 : index
    %c0_11 = arith.constant 0 : index
    %c0_12 = arith.constant 0 : index
    %18 = vector.load %arg5[%c0_10, %c0_11, %c0_12] : memref<1x8x128xf32, #tpu.memory_space<vmem>>, vector<1x8x128xf32>
    %19 = vector.shape_cast %18 : vector<1x8x128xf32> to vector<8x128xf32>
    %20 = vector.shape_cast %17 : vector<8x128xf32> to vector<1x8x128xf32>
    tpu.vector_store %arg5[%c0_10, %c0_11, %c0_12], %20 {strides = array<i32>} : memref<1x8x128xf32, #tpu.memory_space<vmem>>, vector<1x8x128xf32>,
    return
  }
  func.func @transform_0(%arg0: i32, %arg1: i32) -> (i32, i32, i32) {
    %c0_i32 = arith.constant 0 : i32
    %c0_i32_0 = arith.constant 0 : i32
    return %arg0, %arg1, %c0_i32 : i32, i32, i32
  }
  func.func @transform_1(%arg0: i32, %arg1: i32) -> (i32, i32, i32) {
    %c0_i32 = arith.constant 0 : i32
    %c0_i32_0 = arith.constant 0 : i32
    %c0_i32_1 = arith.constant 0 : i32
    return %arg0, %c0_i32, %c0_i32_0 : i32, i32, i32
  }
  func.func @transform_2(%arg0: i32, %arg1: i32) -> (i32, i32) {
    %c0_i32 = arith.constant 0 : i32
    %c0_i32_0 = arith.constant 0 : i32
    %c0_i32_1 = arith.constant 0 : i32
    return %c0_i32, %c0_i32_0 : i32, i32
  }
  func.func @transform_3(%arg0: i32, %arg1: i32) -> (i32, i32, i32) {
    %c0_i32 = arith.constant 0 : i32
    %c0_i32_0 = arith.constant 0 : i32
    return %arg0, %arg1, %c0_i32 : i32, i32, i32
  }
}

</mosaic_0001>

<llo_original>
// kernel: gcn_layer.2
$region0: #{gcn_layer.2}
  #allocation0 [shape = 'u32[]', space=smem, size = 0x4, offset = 0x4, fixed_abs, tag = 'smem constant byte address 0x4 - core index']
  #allocation1 [shape = 'u32[144,128]{1,0:T(1,128)}', space=vmem, size = 0x12000, scoped, tag = 'internal scratch']
  %s0 = inlined_call_operand.vmem [shape: f32[16,16], index: 0, kind: input, shape index: {}]
  %s1 = inlined_call_operand.vmem [shape: f32[16,128], index: 1, kind: input, shape index: {}]
  %s2 = inlined_call_operand.vmem [shape: bf16[16,128], index: 2, kind: output, shape index: {}]
  %s3 = sld [smem:[#allocation0]]
  $region18: #{gcn_layer.2} parent=0
    _
  %s5 = ssub.s32 1, %s3
  %s6 = scalar_select 0, %s5, %s3
  // Predicated region
  $region2: #{gcn_layer.2} parent=0 // pred_check
    _
  $region3: #{gcn_layer.2} parent=0 // pred_check_branch
    %8 = sbr.rel (0) target = $region5
  $region4: #{gcn_layer.2} parent=0 // pred_region
    _
  $region5: #{gcn_layer.2} parent=0 // pred_fallthru
    _
  // Predicated region
  $region6: #{gcn_layer.2} parent=0 // pred_check
    _
  $region7: #{gcn_layer.2} parent=0 // pred_check_branch
    %10 = sbr.rel (0) target = $region9
  $region8: #{gcn_layer.2} parent=0 // pred_region
    _
  $region9: #{gcn_layer.2} parent=0 // pred_fallthru
    _
  %v11 = vld [vmem:[%s0] sm:$0xff]
  %v12 = vld [vmem:[%s0 + $0x8] sm:$0xff]
  %v13 = vld [vmem:[%s1] sm:$0xff]
  %v14 = vld [vmem:[%s1 + $0x8] sm:$0xff]
  %vm15 = vcmask 130048
  %v17 = vsel %vm15, %v11, 0
  %v20 = vsel %vm15, %v12, 0
  %22 = vmatprep.subr.mxu0 0.0
  %23 = vmatpush1.msra.mxu0 %v13
  %24 = vmatprep.subr.mxu0 0.0
  %25 = vmatpush1.msra.mxu0 %v14
  %26 = vmatprep.subr.mxu0 0.0
  %27 = vmatpush1.msra.mxu0 0.0
  %28 = vmatprep.subr.mxu0 0.0
  %29 = vmatpush1.msra.mxu0 0.0
  %30 = vmatprep.subr.mxu0 0.0
  %31 = vmatpush1.msra.mxu0 0.0
  %32 = vmatprep.subr.mxu0 0.0
  %33 = vmatpush1.msra.mxu0 0.0
  %34 = vmatprep.subr.mxu0 0.0
  %35 = vmatpush1.msra.mxu0 0.0
  %36 = vmatprep.subr.mxu0 0.0
  %37 = vmatpush1.msra.mxu0 0.0
  %38 = vmatprep.subr.mxu0 0.0
  %39 = vmatpush1.msra.mxu0 0.0
  %40 = vmatprep.subr.mxu0 0.0
  %41 = vmatpush1.msra.mxu0 0.0
  %42 = vmatprep.subr.mxu0 0.0
  %43 = vmatpush1.msra.mxu0 0.0
  %44 = vmatprep.subr.mxu0 0.0
  %45 = vmatpush1.msra.mxu0 0.0
  %46 = vmatprep.subr.mxu0 0.0
  %47 = vmatpush1.msra.mxu0 0.0
  %48 = vmatprep.subr.mxu0 0.0
  %49 = vmatpush1.msra.mxu0 0.0
  %50 = vmatprep.subr.mxu0 0.0
  %51 = vmatpush1.msra.mxu0 0.0
  %52 = vmatprep.subr.mxu0 0.0
  %53 = vmatpush1.msra.mxu0 0.0
  %54 = vmatprep.subr.mxu0 0.0
  %55 = vmatpush1.msra.mxu0 0.0
  %56 = vmatprep.subr.mxu0 0.0
  %57 = vmatpush1.msra.mxu0 0.0
  %58 = vmatprep.subr.mxu0 0.0
  %59 = vmatpush1.msra.mxu0 0.0
  %60 = vmatprep.subr.mxu0 0.0
  %61 = vmatpush1.msra.mxu0 0.0
  %62 = vmatprep.subr.mxu0 0.0
  %63 = vmatpush1.msra.mxu0 0.0
  %64 = vmatprep.subr.mxu0 0.0
  %65 = vmatpush1.msra.mxu0 0.0
  %66 = vmatprep.subr.mxu0 0.0
  %67 = vmatpush1.msra.mxu0 0.0
  %68 = vmatprep.subr.mxu0 0.0
  %69 = vmatpush1.msra.mxu0 0.0
  %70 = vmatprep.subr.mxu0 0.0
  %71 = vmatpush1.msra.mxu0 0.0
  %72 = vmatprep.subr.mxu0 0.0
  %73 = vmatpush1.msra.mxu0 0.0
  %74 = vmatprep.subr.mxu0 0.0
  %75 = vmatpush1.msra.mxu0 0.0
  %76 = vmatprep.subr.mxu0 0.0
  %77 = vmatpush1.msra.mxu0 0.0
  %78 = vmatprep.subr.mxu0 0.0
  %79 = vmatpush1.msra.mxu0 0.0
  %80 = vmatprep.subr.mxu0 0.0
  %81 = vmatpush1.msra.mxu0 0.0
  %82 = vmatprep.subr.mxu0 0.0
  %83 = vmatpush1.msra.mxu0 0.0
  %84 = vmatprep.subr.mxu0 0.0
  %85 = vmatpush1.msra.mxu0 0.0
  %86 = vmatprep.mubr.f32.mxu0 0.0
  %87 = vmatmul.mubr.f32.gmra.mrb[0].mxu0 %v17
  %v88 = vpop.f32.mrb[0].mxu0
  %v89 = vadd.f32 0.0, %v88
  %v90 = vpop.f32.mrb[0].mxu0
  %91 = vmatprep.mubr.f32.mxu0 0.0
  %92 = vmatmul.mubr.f32.gmra.mrb[0].mxu0 %v20
  %v93 = vpop.f32.mrb[0].mxu0
  %v94 = vadd.f32 0.0, %v93
  %v95 = vpop.f32.mrb[0].mxu0
  %96 = vdwg.mxu0
  %v97 = vpack.c.bf16 %v94, %v89
  %v99 = vunpack.c.l.b16 %v97
  %v100 = vunpack.c.h.b16 %v97
  %v101 = vpack.c.b16 %v99, %v99
  %v102 = vpack.c.b16 %v100, %v100
  %105 = vst [vmem:[%s2] sm:$0xf] %v101
  %106 = vst [vmem:[%s2 + $0x4] sm:$0xf] %v102
  // Predicated region
  $region10: #{gcn_layer.2} parent=0 // pred_check
    _
  $region11: #{gcn_layer.2} parent=0 // pred_check_branch
    %108 = sbr.rel (0) target = $region13
  $region12: #{gcn_layer.2} parent=0 // pred_region
    _
  $region13: #{gcn_layer.2} parent=0 // pred_fallthru
    _
  // Predicated region
  $region14: #{gcn_layer.2} parent=0 // pred_check
    _
  $region15: #{gcn_layer.2} parent=0 // pred_check_branch
    %110 = sbr.rel (0) target = $region17
  $region16: #{gcn_layer.2} parent=0 // pred_region
    _
  $region17: #{gcn_layer.2} parent=0 // pred_fallthru
    _

// kernel: gcn_layer.3
$region0: #{gcn_layer.3}
  #allocation0 [shape = 'u32[]', space=smem, size = 0x4, offset = 0x4, fixed_abs, tag = 'smem constant byte address 0x4 - core index']
  #allocation1 [shape = 'u32[144,128]{1,0:T(1,128)}', space=vmem, size = 0x12000, scoped, tag = 'internal scratch']
  %s0 = inlined_call_operand.vmem [shape: bf16[2,8,8], index: 0, kind: input, shape index: {}]
  %s1 = inlined_call_operand.vmem [shape: bf16[2,8,128], index: 1, kind: input, shape index: {}]
  %s2 = inlined_call_operand.vmem [shape: f32[1,128], index: 2, kind: input, shape index: {}]
  %s3 = inlined_call_operand.hbm [shape: f32[2,8,128], index: 3, kind: output, shape index: {}]
  %s4 = sld [smem:[#allocation0]]
  $region45: #{gcn_layer.3} parent=0
    _
  %s6 = ssub.s32 1, %s4
  %s7 = scalar_select 0, %s6, %s4
  $region1: #{gcn_layer.3} parent=0
    #allocation2 [shape = 'u8[8192]{0}', space=vmem, size = 0x2000, scoped, tag = 'output window, operand 0']
    #allocation3 [shape = 's32[2]{0}', space=sflag, size = 0x8, scoped, tag = 'scoped memory for gcn_layer.3']
    %8 = vsyncpa [#allocation3], 0
    %s9 = scalar_lea.sflag [#allocation3], 1
    %10 = vsyncpa %s9, 0
    loop: start=0, step=1, limit=4
    $region2: #{gcn_layer.3} parent=1 // loop_pre_header
      _
    $region3: #{gcn_layer.3} parent=1 // loop_header
      %s12 = sphi 0, %s16
      %p13 = scmp.ge.s32.totalorder %s12, 4
      %s19 = sphi 0, %s31
      %s20 = sphi 0, %s27
      %s21 = sphi 0, %s19
      %s22 = sphi 0, %s20
      %s23 = sphi 0, %s21
      %s24 = sphi 0, %s22
      %s36 = sphi 0, %s38
      %s39 = sphi 0, %s36
      %s40 = sphi 0, %s39
      %s56 = sphi 0, %s40
      %s62 = sphi 0, %s64
      %s65 = sphi 0, %s62
      %s66 = sphi 0, %s65
      %s82 = sphi 0, %s66
      %s86 = sphi 0, %s86
      %s88 = sphi 0, %s86
      %s89 = sphi 0, %s88
      %s103 = sphi 0, %s89
      %s111 = sphi 0, %s113
      %s114 = sphi 0, %s111
      %s115 = sphi 0, %s114
      %s131 = sphi 0, %s115
    $region4: #{gcn_layer.3} parent=1 // loop_header_branch
      %15 = sbr.rel (%p13) target = $region8
    $region5: #{gcn_layer.3} parent=1 // loop_body
      %s17 = ssub.s32 %s12, 1
      %s18 = ssub.s32 %s12, 2
      %s25 = sadd.s32 1, %s20
      %p26 = scmp.ge.s32.totalorder %s25, 1
      %s27 = scalar_select %p26, 0, %s25
      %s28 = sadd.s32 1, %s19
      %s29 = scalar_select %p26, %s28, %s19
      %p30 = scmp.ge.s32.totalorder %s29, 2
      %s31 = scalar_select %p30, 0, %s29
      %s32 = ssub.s32 %s19, %s31
      %s33 = ssub.s32 %s20, %s27
      %s34 = sor.u32 %s32, %s33
      %p35 = scmp.eq.s32.totalorder %s34, 0
      %s37 = sadd.s32 %s36, 1
      %s38 = scalar_select %p35, %s36, %s37
      %p41 = pneg %p35
      %p42 = scmp.eq.s32.totalorder %s12, 1
      %p43 = por %p41, %p42
      %p44 = scmp.ne.s32.totalorder %s36, %s39
      %p45 = scmp.eq.s32.totalorder %s12, 0
      %p46 = por %p44, %p45
      %p47 = scmp.ne.s32.totalorder %s36, %s39
      %p48 = scmp.eq.s32.totalorder %s17, 1
      %p49 = por %p47, %p48
      %p50 = scmp.ne.s32.totalorder %s39, %s40
      %p51 = scmp.eq.s32.totalorder %s17, 0
      %p52 = por %p50, %p51
      %p53 = scmp.ne.s32.totalorder %s39, %s40
      %p54 = scmp.eq.s32.totalorder %s18, 1
      %p55 = por %p53, %p54
      %p57 = scmp.ne.s32.totalorder %s40, %s56
      %p58 = scmp.eq.s32.totalorder %s18, 0
      %p59 = por %p57, %p58
      %s60 = ssub.s32 %s19, %s31
      %p61 = scmp.eq.s32.totalorder %s60, 0
      %s63 = sadd.s32 %s62, 1
      %s64 = scalar_select %p61, %s62, %s63
      %p67 = pneg %p61
      %p68 = scmp.eq.s32.totalorder %s12, 1
      %p69 = por %p67, %p68
      %p70 = scmp.ne.s32.totalorder %s62, %s65
      %p71 = scmp.eq.s32.totalorder %s12, 0
      %p72 = por %p70, %p71
      %p73 = scmp.ne.s32.totalorder %s62, %s65
      %p74 = scmp.eq.s32.totalorder %s17, 1
      %p75 = por %p73, %p74
      %p76 = scmp.ne.s32.totalorder %s65, %s66
      %p77 = scmp.eq.s32.totalorder %s17, 0
      %p78 = por %p76, %p77
      %p79 = scmp.ne.s32.totalorder %s65, %s66
      %p80 = scmp.eq.s32.totalorder %s18, 1
      %p81 = por %p79, %p80
      %p83 = scmp.ne.s32.totalorder %s66, %s82
      %p84 = scmp.eq.s32.totalorder %s18, 0
      %p85 = por %p83, %p84
      %s87 = sadd.s32 %s86, 1
      %p90 = scmp.eq.s32.totalorder %s12, 1
      %p91 = scmp.ne.s32.totalorder %s86, %s88
      %p92 = scmp.eq.s32.totalorder %s12, 0
      %p93 = por %p91, %p92
      %p94 = scmp.ne.s32.totalorder %s86, %s88
      %p95 = scmp.eq.s32.totalorder %s17, 1
      %p96 = por %p94, %p95
      %p97 = scmp.ne.s32.totalorder %s88, %s89
      %p98 = scmp.eq.s32.totalorder %s17, 0
      %p99 = por %p97, %p98
      %p100 = scmp.ne.s32.totalorder %s88, %s89
      %p101 = scmp.eq.s32.totalorder %s18, 1
      %p102 = por %p100, %p101
      %p104 = scmp.ne.s32.totalorder %s89, %s103
      %p105 = scmp.eq.s32.totalorder %s18, 0
      %p106 = por %p104, %p105
      %s107 = ssub.s32 %s19, %s31
      %s108 = ssub.s32 %s20, %s27
      %s109 = sor.u32 %s107, %s108
      %p110 = scmp.eq.s32.totalorder %s109, 0
      %s112 = sadd.s32 %s111, 1
      %s113 = scalar_select %p110, %s111, %s112
      %p116 = pneg %p110
      %p117 = scmp.eq.s32.totalorder %s12, 1
      %p118 = por %p116, %p117
      %p119 = scmp.ne.s32.totalorder %s111, %s114
      %p120 = scmp.eq.s32.totalorder %s12, 0
      %p121 = por %p119, %p120
      %p122 = scmp.ne.s32.totalorder %s111, %s114
      %p123 = scmp.eq.s32.totalorder %s17, 1
      %p124 = por %p122, %p123
      %p125 = scmp.ne.s32.totalorder %s114, %s115
      %p126 = scmp.eq.s32.totalorder %s17, 0
      %p127 = por %p125, %p126
      %p128 = scmp.ne.s32.totalorder %s114, %s115
      %p129 = scmp.eq.s32.totalorder %s18, 1
      %p130 = por %p128, %p129
      %p132 = scmp.ne.s32.totalorder %s115, %s131
      %p133 = scmp.eq.s32.totalorder %s18, 0
      %p134 = por %p132, %p133
      %p135 = scmp.le.s32.totalorder 1, %s12
      %p136 = scmp.lt.s32.totalorder %s12, 3
      %p137 = pnand %p135, %p136
      %p138 = pneg %p137
      // Predicated region
      $region9: #{gcn_layer.3} parent=5 // pred_check
        _
      $region10: #{gcn_layer.3} parent=5 // pred_check_branch
        %140 = sbr.rel (%p137) target = $region12
      $region11: #{gcn_layer.3} parent=5 // pred_region
        %s141 = ssub.s32 %s12, 1
        // Predicated region
        $region13: #{gcn_layer.3} parent=11 // pred_check
          %p142 = pneg %p99
        $region14: #{gcn_layer.3} parent=11 // pred_check_branch
          %144 = sbr.rel (%p142) target = $region16
        $region15: #{gcn_layer.3} parent=11 // pred_region
          _
        $region16: #{gcn_layer.3} parent=11 // pred_fallthru
          _
      $region12: #{gcn_layer.3} parent=5 // pred_fallthru
        _
      %p145 = scmp.lt.s32.totalorder %s12, 2
      // Predicated region
      $region17: #{gcn_layer.3} parent=5 // pred_check
        %p146 = pneg %p145
      $region18: #{gcn_layer.3} parent=5 // pred_check_branch
        %148 = sbr.rel (%p146) target = $region20
      $region19: #{gcn_layer.3} parent=5 // pred_region
        // Predicated region
        $region21: #{gcn_layer.3} parent=19 // pred_check
          %p149 = pneg %p46
        $region22: #{gcn_layer.3} parent=19 // pred_check_branch
          %151 = sbr.rel (%p149) target = $region24
        $region23: #{gcn_layer.3} parent=19 // pred_region
          %p152 = scmp.lt.s32.totalorder %s19, 1
          %s153 = scalar_select %p152, %s19, 1
          %p154 = scmp.lt.s32.totalorder %s20, 0
          %s155 = scalar_select %p154, %s20, 0
          %s156 = sadd.s32 %s155, %s153
          %s157 = smul.addr %s156, 4
          %s158 = scalar_lea.vmem %s0, %s157
        $region24: #{gcn_layer.3} parent=19 // pred_fallthru
          _
        // Predicated region
        $region25: #{gcn_layer.3} parent=19 // pred_check
          %p159 = pneg %p72
        $region26: #{gcn_layer.3} parent=19 // pred_check_branch
          %161 = sbr.rel (%p159) target = $region28
        $region27: #{gcn_layer.3} parent=19 // pred_region
          %p162 = scmp.lt.s32.totalorder %s19, 1
          %s163 = scalar_select %p162, %s19, 1
          %s164 = smul.addr %s163, 4
          %s165 = scalar_lea.vmem %s1, %s164
        $region28: #{gcn_layer.3} parent=19 // pred_fallthru
          _
      $region20: #{gcn_layer.3} parent=5 // pred_fallthru
        _
      %p166 = scmp.le.s32.totalorder 1, %s12
      %p167 = scmp.lt.s32.totalorder %s12, 3
      %p168 = pnand %p166, %p167
      %p169 = pneg %p168
      // Predicated region
      $region29: #{gcn_layer.3} parent=5 // pred_check
        _
      $region30: #{gcn_layer.3} parent=5 // pred_check_branch
        %171 = sbr.rel (%p168) target = $region32
      $region31: #{gcn_layer.3} parent=5 // pred_region
        %s172 = ssub.s32 %s12, 1
        %p173 = scmp.lt.s32.totalorder %s21, 1
        %s174 = scalar_select %p173, %s21, 1
        %p175 = scmp.lt.s32.totalorder %s22, 0
        %s176 = scalar_select %p175, %s22, 0
        %s177 = sadd.s32 %s176, %s174
        %s178 = smul.addr %s177, 4
        %s179 = scalar_lea.vmem %s0, %s178
        %p180 = pneg %p52
        %p181 = pneg %p49
        %p182 = scmp.lt.s32.totalorder %s21, 1
        %s183 = scalar_select %p182, %s21, 1
        %s184 = smul.addr %s183, 4
        %s185 = scalar_lea.vmem %s1, %s184
        %p186 = pneg %p78
        %p187 = pneg %p75
        %p188 = pneg %p99
        %p189 = pneg %p96
        %p190 = pneg %p127
        %p191 = pneg %p124
        %s192 = sand.u32 %s114, 1
        %s193 = scalar_lea.sflag [#allocation3], %s192
        %s194 = sand.u32 %s114, 1
        %s195 = smul.addr %s194, 8
        %s196 = scalar_lea.vmem [#allocation2], %s195
        %p197 = scmp.lt.s32.totalorder %s21, 1
        %s198 = scalar_select %p197, %s21, 1
        %p199 = scmp.lt.s32.totalorder %s22, 0
        %s200 = scalar_select %p199, %s22, 0
        %s201 = sadd.s32 %s200, %s198
        %s202 = smul.addr %s201, 4
        %s203 = scalar_lea.vmem %s0, %s202
        %p204 = scmp.lt.s32.totalorder %s21, 1
        %s205 = scalar_select %p204, %s21, 1
        %s206 = smul.addr %s205, 4
        %s207 = scalar_lea.vmem %s1, %s206
        %v209 = vld [vmem:[%s203] sm:$0xf]
        %v210 = vld [vmem:[%s207] sm:$0xf]
        %v211 = vld [vmem:[%s2] sm:$0x1]
        %v212 = vunpack.c.l.bf16 %v209
        %vm213 = vcmask 64512
        %v214 = vsel %vm213, %v212, 0.0
        %215 = vadd.xlane.f32.xlu0 %v214
        %v216 = vpop.xlane.xlu0 %215
        %v217 = vadd.f32 %v216, 1.0
        %v218 = vrcp.pop %v217
        %v220 = vsel %vm213, %v209, 0
        %vm222 = vcmask 1043456
        %v224 = vsel %vm222, %v210, 0
        %226 = vmatprep.subr.bf16.mxu0 0
        %227 = vmatpush1.bf16.msra.mxu0 %v224
        %228 = vmatprep.subr.bf16.mxu0 0
        %229 = vmatpush1.bf16.msra.mxu0 0
        %230 = vmatprep.subr.bf16.mxu0 0
        %231 = vmatpush1.bf16.msra.mxu0 0
        %232 = vmatprep.subr.bf16.mxu0 0
        %233 = vmatpush1.bf16.msra.mxu0 0
        %234 = vmatprep.subr.bf16.mxu0 0
        %235 = vmatpush1.bf16.msra.mxu0 0
        %236 = vmatprep.subr.bf16.mxu0 0
        %237 = vmatpush1.bf16.msra.mxu0 0
        %238 = vmatprep.subr.bf16.mxu0 0
        %239 = vmatpush1.bf16.msra.mxu0 0
        %240 = vmatprep.subr.bf16.mxu0 0
        %241 = vmatpush1.bf16.msra.mxu0 0
        %242 = vmatprep.subr.bf16.mxu0 0
        %243 = vmatpush1.bf16.msra.mxu0 0
        %244 = vmatprep.subr.bf16.mxu0 0
        %245 = vmatpush1.bf16.msra.mxu0 0
        %246 = vmatprep.subr.bf16.mxu0 0
        %247 = vmatpush1.bf16.msra.mxu0 0
        %248 = vmatprep.subr.bf16.mxu0 0
        %249 = vmatpush1.bf16.msra.mxu0 0
        %250 = vmatprep.subr.bf16.mxu0 0
        %251 = vmatpush1.bf16.msra.mxu0 0
        %252 = vmatprep.subr.bf16.mxu0 0
        %253 = vmatpush1.bf16.msra.mxu0 0
        %254 = vmatprep.subr.bf16.mxu0 0
        %255 = vmatpush1.bf16.msra.mxu0 0
        %256 = vmatprep.subr.bf16.mxu0 0
        %257 = vmatpush1.bf16.msra.mxu0 0
        %258 = vmatprep.mubr.bf16.mxu0 0
        %259 = vmatmul.mubr.bf16.gmra.mrb[0].mxu0 %v220
        %v260 = vpop.f32.mrb[0].mxu0
        %v261 = vadd.f32 0.0, %v260
        %v262 = vpop.f32.mrb[0].mxu0
        %v263 = vpop.f32.mrb[0].mxu0
        %v264 = vpop.f32.mrb[0].mxu0
        %265 = vdwg.mxu0
        %v266 = vmul.f32 %v261, %v218
        %v267 = vmax.f32 %v266, 0.0
        %v269 = vlaneseq
        %v270 = vshrl.u32 %v269, 7
        %v271 = vsub.s32 0, %v270
        %v272 = vrot.slane %v211, %v271
        %v274 = vadd.f32 %v267, %v272
        %275 = vst [vmem:[%s196] sm:$0xff] %v274
        %s276 = sand.u32 %s114, 1
        %s277 = scalar_lea.sflag [#allocation3], %s276
        %s278 = sand.u32 %s114, 1
        %s279 = smul.addr %s278, 8
        %s280 = scalar_lea.vmem [#allocation2], %s279
        // Predicated region
        $region33: #{gcn_layer.3} parent=31 // pred_check
          %p281 = pneg %p124
        $region34: #{gcn_layer.3} parent=31 // pred_check_branch
          %283 = sbr.rel (%p281) target = $region36
        $region35: #{gcn_layer.3} parent=31 // pred_region
          %s285 = ssub.s32 128, 128
          %286 = vsyncadd %s277, %s285
          %s287 = sadd.s32 %s22, %s21
          %s288 = smul.addr %s287, 128
          %s289 = scalar_lea.hbm %s3, %s288
          %s291 = sshll.u32 %s280, 4
          %s292 = int_to_ptr.vmem [resolvable:$true] %s291
          %294 = dma.vmem_to_hbm [thread:$0]  %s292, 128, %s289, %s277
        $region36: #{gcn_layer.3} parent=31 // pred_fallthru
          _
      $region32: #{gcn_layer.3} parent=5 // pred_fallthru
        _
      %p295 = scmp.le.s32.totalorder 2, %s12
      // Predicated region
      $region37: #{gcn_layer.3} parent=5 // pred_check
        %p296 = pneg %p295
      $region38: #{gcn_layer.3} parent=5 // pred_check_branch
        %298 = sbr.rel (%p296) target = $region40
      $region39: #{gcn_layer.3} parent=5 // pred_region
        %s299 = ssub.s32 %s12, 2
        // Predicated region
        $region41: #{gcn_layer.3} parent=39 // pred_check
          %p300 = pneg %p130
        $region42: #{gcn_layer.3} parent=39 // pred_check_branch
          %302 = sbr.rel (%p300) target = $region44
        $region43: #{gcn_layer.3} parent=39 // pred_region
          %s303 = sand.u32 %s115, 1
          %s304 = scalar_lea.sflag [#allocation3], %s303
          %s305 = sand.u32 %s115, 1
          %s306 = smul.addr %s305, 8
          %s307 = scalar_lea.vmem [#allocation2], %s306
          %308 = dma.done %s304, 128
        $region44: #{gcn_layer.3} parent=39 // pred_fallthru
          _
      $region40: #{gcn_layer.3} parent=5 // pred_fallthru
        _
    $region6: #{gcn_layer.3} parent=1 // loop_footer
      %s16 = sadd.s32 1, %s12
    $region7: #{gcn_layer.3} parent=1 // loop_footer_branch
      %11 = sbr.rel target = $region3
    $region8: #{gcn_layer.3} parent=1 // loop_exit
      _
    %309 = vsyncpa [#allocation3], 1
    %s310 = scalar_lea.sflag [#allocation3], 1
    %311 = vsyncpa %s310, 1

</llo_original>
